<compile_context>
chip_gen: v7x
topology: tpu7x:2x2x1
jax: 0.10.0
libtpu: 0.0.40
codegen_flags: <defaults>
</compile_context>

<pallas_src>
import functools

import jax
import jax.numpy as jnp
from jax.experimental import pallas as pl
from jax.experimental.pallas import tpu as pltpu

LANE = 128


def init_params(key, q_dim, a_dim, oup0, oup1, mid):
    """Deterministic synthetic parameters (torch Linear shapes, stored [in, out])."""
    ks = jax.random.split(key, 12)

    def w(k, i, o):
        return jax.random.normal(k, (i, o), jnp.float32) / jnp.sqrt(float(i))

    def b(k, o):
        return 0.01 * jax.random.normal(k, (1, o), jnp.float32)

    return {
        # mlp1 : concat(state, action) -> mid -> mid -> oup0
        "w1": w(ks[0], q_dim + a_dim, mid), "b1": b(ks[1], mid),
        "w2": w(ks[2], mid, mid),           "b2": b(ks[3], mid),
        "w3": w(ks[4], mid, oup0),          "b3": b(ks[5], oup0),
        # mlp2 : (oup0 // 2) -> mid -> mid -> oup1
        "v1": w(ks[6], oup0 // 2, mid),     "c1": b(ks[7], mid),
        "v2": w(ks[8], mid, mid),           "c2": b(ks[9], mid),
        "v3": w(ks[10], mid, oup1),         "c3": b(ks[11], oup1),
    }


def pack_params(params, lane=LANE):
    """Pack the 12 small tensors into two lane-dense slabs (built once)."""
    w_names = ("w1", "w2", "w3", "v1", "v2", "v3")
    b_names = ("b1", "b2", "b3", "c1", "c2", "c3")
    for n in w_names:
        k, o = params[n].shape
        assert k <= lane and o <= lane, "layer dims must fit one 128-lane tile"

    def pad_w(w):
        k, n = w.shape
        return jnp.pad(w, ((0, lane - k), (0, lane - n)))

    # (6, 128, 128) bf16 : zero K-padding means the full-128-lane activation
    # can be fed to every layer (padded lanes contribute exactly 0).
    w_slab = jnp.stack([pad_w(params[n]) for n in w_names]).astype(jnp.bfloat16)

    def pad_b(b):
        return jnp.pad(b, ((0, 0), (0, lane - b.shape[1])))

    b_rows = jnp.concatenate([pad_b(params[n]) for n in b_names], axis=0)   # (6, 128)
    b_slab = jnp.pad(b_rows, ((0, 8 - b_rows.shape[0]), (0, 0))).astype(jnp.float32)
    return w_slab, b_slab


def mlp_arm_forward(state, action, w_slab, b_slab, oup_dims):
    B, q_dim = state.shape
    a_dim = action.shape[1]
    oup0, oup1 = oup_dims
    assert oup0 == q_dim, "residual add requires oup_dims[0] == q_dim (as in torch forward)"
    assert q_dim + a_dim <= LANE

    # Single lane-dense input slab: [state | action | zeros] -> (B, 128) f32.
    x = jnp.pad(jnp.concatenate([state, action], axis=-1).astype(jnp.float32),
                ((0, 0), (0, LANE - (q_dim + a_dim))))

    def kernel(x_ref, w_ref, b_ref, out_ref):
        x_in = x_ref[...]            # (B, 128) f32
        bias = b_ref[...]            # (8, 128) f32

        def dense(v, li, relu):
            # bf16 weights + bf16-cast activations on the MXU, f32 accumulate,
            # f32 bias/ReLU on the VPU.
            y = jnp.dot(v.astype(jnp.bfloat16), w_ref[li],
                        preferred_element_type=jnp.float32)
            y = y + bias[li:li + 1, :]
            return jnp.maximum(y, 0.0) if relu else y

        # ---- mlp1 on concat(state, action) (already packed lane-dense) ----
        h = dense(x_in, 0, True)
        h = dense(h, 1, True)
        y1 = dense(h, 2, False)

        # Residual; mask lanes >= oup0 (those lanes of x_in hold action/zeros)
        # so the new_state slab is clean.
        lane_idx = jax.lax.broadcasted_iota(jnp.int32, x_in.shape, 1)
        ns = jnp.where(lane_idx < oup0, x_in + y1, 0.0)

        # ---- mlp2 ----  rows >= oup0//2 of the packed v1 are zero, so feeding
        # the full 128-lane ns implements the new_state[:, :oup0//2] slice.
        g = dense(ns, 3, True)
        g = dense(g, 4, True)
        o2 = dense(g, 5, False)

        # One lane-dense output slab: slot 0 = new_state, slot 1 = out2.
        out_ref[0, :, :] = ns
        out_ref[1, :, :] = o2

    fn = pl.pallas_call(
        kernel,
        grid=(1,),
        in_specs=[
            pl.BlockSpec((B, LANE), lambda i: (0, 0)),
            pl.BlockSpec(w_slab.shape, lambda i: (0, 0, 0)),
            pl.BlockSpec(b_slab.shape, lambda i: (0, 0)),
        ],
        out_specs=pl.BlockSpec((2, B, LANE), lambda i: (0, 0, 0)),
        out_shape=jax.ShapeDtypeStruct((2, B, LANE), jnp.float32),
        compiler_params=pltpu.CompilerParams(
            dimension_semantics=("arbitrary",)),
    )
    out = fn(x, w_slab, b_slab)
    return out[0, :, :oup0], out[1, :, :oup1]


def reference_forward(state, action, p):
    """Pure-JAX reference mirroring the kernel's precision policy
    (bf16 matmul operands, f32 accumulation / elementwise)."""
    bf, f32 = jnp.bfloat16, jnp.float32

    def lin(x, w, b, relu):
        y = jnp.dot(x.astype(bf), w.astype(bf), preferred_element_type=f32) + b
        return jnp.maximum(y, 0.0) if relu else y

    x = jnp.concatenate([state, action], axis=-1)
    h = lin(x, p["w1"], p["b1"], True)
    h = lin(h, p["w2"], p["b2"], True)
    y1 = lin(h, p["w3"], p["b3"], False)
    ns = state + y1
    half = ns.shape[-1] // 2
    g = lin(ns[:, :half], p["v1"], p["c1"], True)
    g = lin(g, p["v2"], p["c2"], True)
    out2 = lin(g, p["v3"], p["c3"], False)
    return ns, out2


if __name__ == "__main__":
    # MLP_ARM(inp_dim=(16, 8), oup_dims=(16, 8), num_layers=3, mid_channels=32)
    # (oup_dims[0] == q_dim is required by the residual add in the torch forward.)
    B, q_dim, a_dim = 8, 16, 8
    oup0, oup1, mid = 16, 8, 32

    key = jax.random.PRNGKey(0)
    k_s, k_a, k_p = jax.random.split(key, 3)
    state = jax.random.normal(k_s, (B, q_dim), jnp.float32)
    action = jax.random.normal(k_a, (B, a_dim), jnp.float32)
    params = init_params(k_p, q_dim, a_dim, oup0, oup1, mid)
    w_slab, b_slab = pack_params(params)   # built once, reused every call

    new_state, out2 = mlp_arm_forward(state, action, w_slab, b_slab, (oup0, oup1))
    jax.block_until_ready((new_state, out2))

    ref_ns, ref_o2 = reference_forward(state, action, params)
    assert new_state.shape == (B, oup0) and out2.shape == (B, oup1)
    assert jnp.allclose(new_state, ref_ns, atol=1e-2, rtol=1e-2)
    assert jnp.allclose(out2, ref_o2, atol=1e-2, rtol=1e-2)

    print("KERNEL_OK")
</pallas_src>

<mosaic_0001>
module attributes {stable_mosaic.version = 11 : i64} {
  func.func @kernel(%arg0: i32, %arg1: memref<8x128xf32, #tpu.memory_space<vmem>>, %arg2: memref<6x128x128xbf16, #tpu.memory_space<vmem>>, %arg3: memref<8x128xf32, #tpu.memory_space<vmem>>, %arg4: memref<2x8x128xf32, #tpu.memory_space<vmem>>) attributes {dimension_semantics = [#tpu.dimension_semantics<arbitrary>], iteration_bounds = array<i64: 1>, scalar_prefetch = 0 : i64, scratch_operands = 0 : i64, tpu.core_type = #tpu.core_type<tc>, window_params = [{pipeline_mode = #tpu.pipeline_mode<synchronous>, transform_indices = @transform_0, window_bounds = array<i64: 8, 128>}, {pipeline_mode = #tpu.pipeline_mode<synchronous>, transform_indices = @transform_1, window_bounds = array<i64: 6, 128, 128>}, {pipeline_mode = #tpu.pipeline_mode<synchronous>, transform_indices = @transform_2, window_bounds = array<i64: 8, 128>}, {pipeline_mode = #tpu.pipeline_mode<synchronous>, transform_indices = @transform_3, window_bounds = array<i64: 2, 8, 128>}]} {
    %c0 = arith.constant 0 : index
    %c0_0 = arith.constant 0 : index
    %0 = vector.load %arg1[%c0, %c0_0] : memref<8x128xf32, #tpu.memory_space<vmem>>, vector<8x128xf32>
    %c0_1 = arith.constant 0 : index
    %c0_2 = arith.constant 0 : index
    %1 = vector.load %arg3[%c0_1, %c0_2] : memref<8x128xf32, #tpu.memory_space<vmem>>, vector<8x128xf32>
    %2 = arith.truncf %0 : vector<8x128xf32> to vector<8x128xbf16>
    %c0_3 = arith.constant 0 : index
    %c0_4 = arith.constant 0 : index
    %c0_5 = arith.constant 0 : index
    %3 = vector.load %arg2[%c0_3, %c0_4, %c0_5] : memref<6x128x128xbf16, #tpu.memory_space<vmem>>, vector<1x128x128xbf16>
    %4 = vector.shape_cast %3 : vector<1x128x128xbf16> to vector<128x128xbf16>
    %cst = arith.constant dense<0.000000e+00> : vector<8x128xf32>
    %5 = tpu.matmul %2, %4, %cst {dimension_numbers = #tpu.dot_dimension_numbers<[1], [0], [0], [1], [0, 0, 1, 1], [], []>} : vector<8x128xbf16>, vector<128x128xbf16>, vector<8x128xf32> -> vector<8x128xf32>
    %6 = vector.extract_strided_slice %1 {offsets = [0, 0], sizes = [1, 128], strides = [1, 1]} : vector<8x128xf32> to vector<1x128xf32>
    %7 = vector.broadcast %6 : vector<1x128xf32> to vector<8x128xf32>
    %8 = arith.addf %5, %7 : vector<8x128xf32>
    %cst_6 = arith.constant 0.000000e+00 : f32
    %9 = vector.broadcast %cst_6 : f32 to vector<8x128xf32>
    %10 = arith.maximumf %8, %9 : vector<8x128xf32>
    %11 = arith.truncf %10 : vector<8x128xf32> to vector<8x128xbf16>
    %c1 = arith.constant 1 : index
    %c0_7 = arith.constant 0 : index
    %c0_8 = arith.constant 0 : index
    %12 = vector.load %arg2[%c1, %c0_7, %c0_8] : memref<6x128x128xbf16, #tpu.memory_space<vmem>>, vector<1x128x128xbf16>
    %13 = vector.shape_cast %12 : vector<1x128x128xbf16> to vector<128x128xbf16>
    %cst_9 = arith.constant dense<0.000000e+00> : vector<8x128xf32>
    %14 = tpu.matmul %11, %13, %cst_9 {dimension_numbers = #tpu.dot_dimension_numbers<[1], [0], [0], [1], [0, 0, 1, 1], [], []>} : vector<8x128xbf16>, vector<128x128xbf16>, vector<8x128xf32> -> vector<8x128xf32>
    %15 = vector.extract_strided_slice %1 {offsets = [1, 0], sizes = [1, 128], strides = [1, 1]} : vector<8x128xf32> to vector<1x128xf32>
    %16 = vector.broadcast %15 : vector<1x128xf32> to vector<8x128xf32>
    %17 = arith.addf %14, %16 : vector<8x128xf32>
    %cst_10 = arith.constant 0.000000e+00 : f32
    %18 = vector.broadcast %cst_10 : f32 to vector<8x128xf32>
    %19 = arith.maximumf %17, %18 : vector<8x128xf32>
    %20 = arith.truncf %19 : vector<8x128xf32> to vector<8x128xbf16>
    %c2 = arith.constant 2 : index
    %c0_11 = arith.constant 0 : index
    %c0_12 = arith.constant 0 : index
    %21 = vector.load %arg2[%c2, %c0_11, %c0_12] : memref<6x128x128xbf16, #tpu.memory_space<vmem>>, vector<1x128x128xbf16>
    %22 = vector.shape_cast %21 : vector<1x128x128xbf16> to vector<128x128xbf16>
    %cst_13 = arith.constant dense<0.000000e+00> : vector<8x128xf32>
    %23 = tpu.matmul %20, %22, %cst_13 {dimension_numbers = #tpu.dot_dimension_numbers<[1], [0], [0], [1], [0, 0, 1, 1], [], []>} : vector<8x128xbf16>, vector<128x128xbf16>, vector<8x128xf32> -> vector<8x128xf32>
    %24 = vector.extract_strided_slice %1 {offsets = [2, 0], sizes = [1, 128], strides = [1, 1]} : vector<8x128xf32> to vector<1x128xf32>
    %25 = vector.broadcast %24 : vector<1x128xf32> to vector<8x128xf32>
    %26 = arith.addf %23, %25 : vector<8x128xf32>
    %27 = tpu.iota {dimensions = array<i32: 1>} : vector<8x128xi32>
    %c16_i32 = arith.constant 16 : i32
    %28 = vector.broadcast %c16_i32 : i32 to vector<8x128xi32>
    %29 = arith.cmpi slt, %27, %28 : vector<8x128xi32>
    %30 = arith.addf %0, %26 : vector<8x128xf32>
    %cst_14 = arith.constant 0.000000e+00 : f32
    %31 = vector.broadcast %cst_14 : f32 to vector<8x128xf32>
    %32 = arith.select %29, %30, %31 : vector<8x128xi1>, vector<8x128xf32>
    %33 = arith.truncf %32 : vector<8x128xf32> to vector<8x128xbf16>
    %c3 = arith.constant 3 : index
    %c0_15 = arith.constant 0 : index
    %c0_16 = arith.constant 0 : index
    %34 = vector.load %arg2[%c3, %c0_15, %c0_16] : memref<6x128x128xbf16, #tpu.memory_space<vmem>>, vector<1x128x128xbf16>
    %35 = vector.shape_cast %34 : vector<1x128x128xbf16> to vector<128x128xbf16>
    %cst_17 = arith.constant dense<0.000000e+00> : vector<8x128xf32>
    %36 = tpu.matmul %33, %35, %cst_17 {dimension_numbers = #tpu.dot_dimension_numbers<[1], [0], [0], [1], [0, 0, 1, 1], [], []>} : vector<8x128xbf16>, vector<128x128xbf16>, vector<8x128xf32> -> vector<8x128xf32>
    %37 = vector.extract_strided_slice %1 {offsets = [3, 0], sizes = [1, 128], strides = [1, 1]} : vector<8x128xf32> to vector<1x128xf32>
    %38 = vector.broadcast %37 : vector<1x128xf32> to vector<8x128xf32>
    %39 = arith.addf %36, %38 : vector<8x128xf32>
    %cst_18 = arith.constant 0.000000e+00 : f32
    %40 = vector.broadcast %cst_18 : f32 to vector<8x128xf32>
    %41 = arith.maximumf %39, %40 : vector<8x128xf32>
    %42 = arith.truncf %41 : vector<8x128xf32> to vector<8x128xbf16>
    %c4 = arith.constant 4 : index
    %c0_19 = arith.constant 0 : index
    %c0_20 = arith.constant 0 : index
    %43 = vector.load %arg2[%c4, %c0_19, %c0_20] : memref<6x128x128xbf16, #tpu.memory_space<vmem>>, vector<1x128x128xbf16>
    %44 = vector.shape_cast %43 : vector<1x128x128xbf16> to vector<128x128xbf16>
    %cst_21 = arith.constant dense<0.000000e+00> : vector<8x128xf32>
    %45 = tpu.matmul %42, %44, %cst_21 {dimension_numbers = #tpu.dot_dimension_numbers<[1], [0], [0], [1], [0, 0, 1, 1], [], []>} : vector<8x128xbf16>, vector<128x128xbf16>, vector<8x128xf32> -> vector<8x128xf32>
    %46 = vector.extract_strided_slice %1 {offsets = [4, 0], sizes = [1, 128], strides = [1, 1]} : vector<8x128xf32> to vector<1x128xf32>
    %47 = vector.broadcast %46 : vector<1x128xf32> to vector<8x128xf32>
    %48 = arith.addf %45, %47 : vector<8x128xf32>
    %cst_22 = arith.constant 0.000000e+00 : f32
    %49 = vector.broadcast %cst_22 : f32 to vector<8x128xf32>
    %50 = arith.maximumf %48, %49 : vector<8x128xf32>
    %51 = arith.truncf %50 : vector<8x128xf32> to vector<8x128xbf16>
    %c5 = arith.constant 5 : index
    %c0_23 = arith.constant 0 : index
    %c0_24 = arith.constant 0 : index
    %52 = vector.load %arg2[%c5, %c0_23, %c0_24] : memref<6x128x128xbf16, #tpu.memory_space<vmem>>, vector<1x128x128xbf16>
    %53 = vector.shape_cast %52 : vector<1x128x128xbf16> to vector<128x128xbf16>
    %cst_25 = arith.constant dense<0.000000e+00> : vector<8x128xf32>
    %54 = tpu.matmul %51, %53, %cst_25 {dimension_numbers = #tpu.dot_dimension_numbers<[1], [0], [0], [1], [0, 0, 1, 1], [], []>} : vector<8x128xbf16>, vector<128x128xbf16>, vector<8x128xf32> -> vector<8x128xf32>
    %55 = vector.extract_strided_slice %1 {offsets = [5, 0], sizes = [1, 128], strides = [1, 1]} : vector<8x128xf32> to vector<1x128xf32>
    %56 = vector.broadcast %55 : vector<1x128xf32> to vector<8x128xf32>
    %57 = arith.addf %54, %56 : vector<8x128xf32>
    %c0_26 = arith.constant 0 : index
    %c0_27 = arith.constant 0 : index
    %c0_28 = arith.constant 0 : index
    %58 = vector.load %arg4[%c0_26, %c0_27, %c0_28] : memref<2x8x128xf32, #tpu.memory_space<vmem>>, vector<1x8x128xf32>
    %59 = vector.shape_cast %58 : vector<1x8x128xf32> to vector<8x128xf32>
    %60 = vector.shape_cast %32 : vector<8x128xf32> to vector<1x8x128xf32>
    tpu.vector_store %arg4[%c0_26, %c0_27, %c0_28], %60 {strides = array<i32>} : memref<2x8x128xf32, #tpu.memory_space<vmem>>, vector<1x8x128xf32>,
    %c1_29 = arith.constant 1 : index
    %c0_30 = arith.constant 0 : index
    %c0_31 = arith.constant 0 : index
    %61 = vector.load %arg4[%c1_29, %c0_30, %c0_31] : memref<2x8x128xf32, #tpu.memory_space<vmem>>, vector<1x8x128xf32>
    %62 = vector.shape_cast %61 : vector<1x8x128xf32> to vector<8x128xf32>
    %63 = vector.shape_cast %57 : vector<8x128xf32> to vector<1x8x128xf32>
    tpu.vector_store %arg4[%c1_29, %c0_30, %c0_31], %63 {strides = array<i32>} : memref<2x8x128xf32, #tpu.memory_space<vmem>>, vector<1x8x128xf32>,
    return
  }
  func.func @transform_0(%arg0: i32) -> (i32, i32) {
    %c0_i32 = arith.constant 0 : i32
    %c0_i32_0 = arith.constant 0 : i32
    %c0_i32_1 = arith.constant 0 : i32
    return %c0_i32, %c0_i32_0 : i32, i32
  }
  func.func @transform_1(%arg0: i32) -> (i32, i32, i32) {
    %c0_i32 = arith.constant 0 : i32
    %c0_i32_0 = arith.constant 0 : i32
    %c0_i32_1 = arith.constant 0 : i32
    %c0_i32_2 = arith.constant 0 : i32
    return %c0_i32, %c0_i32_0, %c0_i32_1 : i32, i32, i32
  }
  func.func @transform_2(%arg0: i32) -> (i32, i32) {
    %c0_i32 = arith.constant 0 : i32
    %c0_i32_0 = arith.constant 0 : i32
    %c0_i32_1 = arith.constant 0 : i32
    return %c0_i32, %c0_i32_0 : i32, i32
  }
  func.func @transform_3(%arg0: i32) -> (i32, i32, i32) {
    %c0_i32 = arith.constant 0 : i32
    %c0_i32_0 = arith.constant 0 : i32
    %c0_i32_1 = arith.constant 0 : i32
    %c0_i32_2 = arith.constant 0 : i32
    return %c0_i32, %c0_i32_0, %c0_i32_1 : i32, i32, i32
  }
}

</mosaic_0001>

<llo_original>
// kernel: tpu_custom_call.1
$region0: #{tpu_custom_call.1}
  #allocation0 [shape = 'u32[]', space=smem, size = 0x4, offset = 0x4, fixed_abs, tag = 'smem constant byte address 0x4 - core index']
  #allocation1 [shape = 'u32[144,128]{1,0:T(1,128)}', space=vmem, size = 0x12000, scoped, tag = 'internal scratch']
  %s0 = inlined_call_operand.hbm [shape: f32[8,128], index: 0, kind: input, shape index: {}]
  %s1 = inlined_call_operand.hbm [shape: bf16[6,128,128], index: 1, kind: input, shape index: {}]
  %s2 = inlined_call_operand.hbm [shape: f32[8,128], index: 2, kind: input, shape index: {}]
  %s3 = inlined_call_operand.hbm [shape: f32[2,8,128], index: 3, kind: output, shape index: {}]
  %s4 = sld [smem:[#allocation0]]
  $region34: #{tpu_custom_call.1} parent=0
    _
  %s6 = ssub.s32 1, %s4
  %s7 = scalar_select 0, %s6, %s4
  $region1: #{tpu_custom_call.1} parent=0
    #allocation2 [shape = 'u8[4096]{0}', space=vmem, size = 0x1000, scoped, tag = 'input window, operand 0, single buffered']
    #allocation3 [shape = 's32[1]{0}', space=sflag, size = 0x4, scoped, tag = 'scoped memory for tpu_custom_call.1']
    #allocation4 [shape = 's32[1]{0}', space=sflag, size = 0x4, scoped, tag = 'scoped memory for tpu_custom_call.1']
    #allocation5 [shape = 'u8[196608]{0}', space=vmem, size = 0x30000, scoped, tag = 'input window, operand 1, single buffered']
    #allocation6 [shape = 's32[1]{0}', space=sflag, size = 0x4, scoped, tag = 'scoped memory for tpu_custom_call.1']
    #allocation7 [shape = 'u8[4096]{0}', space=vmem, size = 0x1000, scoped, tag = 'input window, operand 2, single buffered']
    #allocation8 [shape = 'u8[8192]{0}', space=vmem, size = 0x2000, scoped, tag = 'output window, operand 0, single buffered']
    %8 = vsyncpa [#allocation3], 0
    %9 = vsyncpa [#allocation6], 0
    %10 = vsyncpa [#allocation4], 0
    // Predicated region
    $region2: #{tpu_custom_call.1} parent=1 // pred_check
      _
    $region3: #{tpu_custom_call.1} parent=1 // pred_check_branch
      %12 = sbr.rel (0) target = $region5
    $region4: #{tpu_custom_call.1} parent=1 // pred_region
      %s14 = ssub.s32 128, 128
      %15 = vsyncadd [#allocation3], %s14
      %s17 = sshll.u32 [#allocation2], 4
      %s18 = int_to_ptr.vmem [resolvable:$true] %s17
      %20 = dma.hbm_to_vmem [thread:$0]  %s0, 128, %s18, [#allocation3]
    $region5: #{tpu_custom_call.1} parent=1 // pred_fallthru
      _
    // Predicated region
    $region6: #{tpu_custom_call.1} parent=1 // pred_check
      _
    $region7: #{tpu_custom_call.1} parent=1 // pred_check_branch
      %22 = sbr.rel (0) target = $region9
    $region8: #{tpu_custom_call.1} parent=1 // pred_region
      %s24 = ssub.s32 6144, 6144
      %25 = vsyncadd [#allocation6], %s24
      %s26 = sshll.u32 [#allocation5], 4
      %s27 = int_to_ptr.vmem [resolvable:$true] %s26
      %32 = dma.hbm_to_vmem [thread:$0]  %s1, 6144, %s27, [#allocation6], 64, 64, 4
    $region9: #{tpu_custom_call.1} parent=1 // pred_fallthru
      _
    // Predicated region
    $region10: #{tpu_custom_call.1} parent=1 // pred_check
      _
    $region11: #{tpu_custom_call.1} parent=1 // pred_check_branch
      %34 = sbr.rel (0) target = $region13
    $region12: #{tpu_custom_call.1} parent=1 // pred_region
      %s36 = ssub.s32 128, 128
      %37 = vsyncadd [#allocation6], %s36
      %s39 = sshll.u32 [#allocation7], 4
      %s40 = int_to_ptr.vmem [resolvable:$true] %s39
      %42 = dma.hbm_to_vmem [thread:$0]  %s2, 128, %s40, [#allocation6]
    $region13: #{tpu_custom_call.1} parent=1 // pred_fallthru
      _
    // Predicated region
    $region14: #{tpu_custom_call.1} parent=1 // pred_check
      _
    $region15: #{tpu_custom_call.1} parent=1 // pred_check_branch
      %44 = sbr.rel (0) target = $region17
    $region16: #{tpu_custom_call.1} parent=1 // pred_region
      %45 = dma.done [#allocation3], 128
    $region17: #{tpu_custom_call.1} parent=1 // pred_fallthru
      _
    // Predicated region
    $region18: #{tpu_custom_call.1} parent=1 // pred_check
      _
    $region19: #{tpu_custom_call.1} parent=1 // pred_check_branch
      %47 = sbr.rel (0) target = $region21
    $region20: #{tpu_custom_call.1} parent=1 // pred_region
      %48 = dma.done [#allocation6], 6144
    $region21: #{tpu_custom_call.1} parent=1 // pred_fallthru
      _
    // Predicated region
    $region22: #{tpu_custom_call.1} parent=1 // pred_check
      _
    $region23: #{tpu_custom_call.1} parent=1 // pred_check_branch
      %50 = sbr.rel (0) target = $region25
    $region24: #{tpu_custom_call.1} parent=1 // pred_region
      %51 = dma.done [#allocation6], 128
    $region25: #{tpu_custom_call.1} parent=1 // pred_fallthru
      _
    %v53 = vld [vmem:[#allocation2] sm:$0xff]
    %v54 = vld [vmem:[#allocation7] sm:$0xff]
    %v55 = vpack.c.bf16 %v53, %v53
    %v56 = vld [vmem:[#allocation5] sm:$0xf]
    %v57 = vld [vmem:[#allocation5 + $0x4] sm:$0xf]
    %v58 = vld [vmem:[#allocation5 + $0x8] sm:$0xf]
    %v59 = vld [vmem:[#allocation5 + $0xc] sm:$0xf]
    %v60 = vld [vmem:[#allocation5 + $0x10] sm:$0xf]
    %v61 = vld [vmem:[#allocation5 + $0x14] sm:$0xf]
    %v62 = vld [vmem:[#allocation5 + $0x18] sm:$0xf]
    %v63 = vld [vmem:[#allocation5 + $0x1c] sm:$0xf]
    %v64 = vld [vmem:[#allocation5 + $0x20] sm:$0xf]
    %v65 = vld [vmem:[#allocation5 + $0x24] sm:$0xf]
    %v66 = vld [vmem:[#allocation5 + $0x28] sm:$0xf]
    %v67 = vld [vmem:[#allocation5 + $0x2c] sm:$0xf]
    %v68 = vld [vmem:[#allocation5 + $0x30] sm:$0xf]
    %v69 = vld [vmem:[#allocation5 + $0x34] sm:$0xf]
    %v70 = vld [vmem:[#allocation5 + $0x38] sm:$0xf]
    %v71 = vld [vmem:[#allocation5 + $0x3c] sm:$0xf]
    %v72 = vlaneseq
    %v73 = vshrl.u32 %v72, 7
    %v74 = vsub.s32 0, %v73
    %v75 = vrot.slane %v54, %v74
    %v92 = vunpack.c.l.b16 %v56
    %v93 = vunpack.c.l.b16 %v57
    %v94 = vunpack.c.l.b16 %v58
    %v95 = vunpack.c.l.b16 %v59
    %v96 = vunpack.c.l.b16 %v60
    %v97 = vunpack.c.l.b16 %v61
    %v98 = vunpack.c.l.b16 %v62
    %v99 = vunpack.c.l.b16 %v63
    %v100 = vunpack.c.l.b16 %v64
    %v101 = vunpack.c.l.b16 %v65
    %v102 = vunpack.c.l.b16 %v66
    %v103 = vunpack.c.l.b16 %v67
    %v104 = vunpack.c.l.b16 %v68
    %v105 = vunpack.c.l.b16 %v69
    %v106 = vunpack.c.l.b16 %v70
    %v107 = vunpack.c.l.b16 %v71
    %v108 = vpack.c.b16 %v93, %v92
    %v109 = vpack.c.b16 %v95, %v94
    %v110 = vpack.c.b16 %v97, %v96
    %v111 = vpack.c.b16 %v99, %v98
    %v112 = vpack.c.b16 %v101, %v100
    %v113 = vpack.c.b16 %v103, %v102
    %v114 = vpack.c.b16 %v105, %v104
    %v115 = vpack.c.b16 %v107, %v106
    %124 = vmatprep.subr.bf16.mxu0 0
    %125 = vmatpush1.bf16.msra.mxu0 %v108
    %126 = vmatprep.subr.bf16.mxu0 0
    %127 = vmatpush1.bf16.msra.mxu0 %v109
    %128 = vmatprep.subr.bf16.mxu0 0
    %129 = vmatpush1.bf16.msra.mxu0 %v110
    %130 = vmatprep.subr.bf16.mxu0 0
    %131 = vmatpush1.bf16.msra.mxu0 %v111
    %132 = vmatprep.subr.bf16.mxu0 0
    %133 = vmatpush1.bf16.msra.mxu0 %v112
    %134 = vmatprep.subr.bf16.mxu0 0
    %135 = vmatpush1.bf16.msra.mxu0 %v113
    %136 = vmatprep.subr.bf16.mxu0 0
    %137 = vmatpush1.bf16.msra.mxu0 %v114
    %138 = vmatprep.subr.bf16.mxu0 0
    %139 = vmatpush1.bf16.msra.mxu0 %v115
    %140 = vmatprep.subr.bf16.mxu0 0
    %141 = vmatpush1.bf16.msra.mxu0 0
    %142 = vmatprep.subr.bf16.mxu0 0
    %143 = vmatpush1.bf16.msra.mxu0 0
    %144 = vmatprep.subr.bf16.mxu0 0
    %145 = vmatpush1.bf16.msra.mxu0 0
    %146 = vmatprep.subr.bf16.mxu0 0
    %147 = vmatpush1.bf16.msra.mxu0 0
    %148 = vmatprep.subr.bf16.mxu0 0
    %149 = vmatpush1.bf16.msra.mxu0 0
    %150 = vmatprep.subr.bf16.mxu0 0
    %151 = vmatpush1.bf16.msra.mxu0 0
    %152 = vmatprep.subr.bf16.mxu0 0
    %153 = vmatpush1.bf16.msra.mxu0 0
    %154 = vmatprep.subr.bf16.mxu0 0
    %155 = vmatpush1.bf16.msra.mxu0 0
    %156 = vmatprep.mubr.bf16.mxu0 0
    %157 = vmatmul.mubr.bf16.gmra.mrb[0].mxu0 %v55
    %v158 = vpop.f32.mrb[0].mxu0
    %v159 = vadd.f32 %v75, %v158
    %v160 = vpop.f32.mrb[0].mxu0
    %v161 = vpop.f32.mrb[0].mxu0
    %v162 = vpop.f32.mrb[0].mxu0
    %163 = vdwg.mxu0
    %v164 = vmax.f32 %v159, 0.0
    %v165 = vpack.c.bf16 %v164, %v164
    %s166 = scalar_lea.vmem [#allocation5], 64
    %v167 = vld [vmem:[%s166] sm:$0xf]
    %v168 = vld [vmem:[%s166 + $0x4] sm:$0xf]
    %v169 = vld [vmem:[%s166 + $0x8] sm:$0xf]
    %v170 = vld [vmem:[%s166 + $0xc] sm:$0xf]
    %v171 = vld [vmem:[%s166 + $0x10] sm:$0xf]
    %v172 = vld [vmem:[%s166 + $0x14] sm:$0xf]
    %v173 = vld [vmem:[%s166 + $0x18] sm:$0xf]
    %v174 = vld [vmem:[%s166 + $0x1c] sm:$0xf]
    %v175 = vld [vmem:[%s166 + $0x20] sm:$0xf]
    %v176 = vld [vmem:[%s166 + $0x24] sm:$0xf]
    %v177 = vld [vmem:[%s166 + $0x28] sm:$0xf]
    %v178 = vld [vmem:[%s166 + $0x2c] sm:$0xf]
    %v179 = vld [vmem:[%s166 + $0x30] sm:$0xf]
    %v180 = vld [vmem:[%s166 + $0x34] sm:$0xf]
    %v181 = vld [vmem:[%s166 + $0x38] sm:$0xf]
    %v182 = vld [vmem:[%s166 + $0x3c] sm:$0xf]
    %v183 = vlaneseq
    %v184 = vshrl.u32 %v183, 7
    %v185 = vsub.s32 1, %v184
    %v186 = vrot.slane %v54, %v185
    %v203 = vunpack.c.l.b16 %v167
    %v204 = vunpack.c.l.b16 %v168
    %v205 = vunpack.c.l.b16 %v169
    %v206 = vunpack.c.l.b16 %v170
    %v207 = vunpack.c.l.b16 %v171
    %v208 = vunpack.c.l.b16 %v172
    %v209 = vunpack.c.l.b16 %v173
    %v210 = vunpack.c.l.b16 %v174
    %v211 = vunpack.c.l.b16 %v175
    %v212 = vunpack.c.l.b16 %v176
    %v213 = vunpack.c.l.b16 %v177
    %v214 = vunpack.c.l.b16 %v178
    %v215 = vunpack.c.l.b16 %v179
    %v216 = vunpack.c.l.b16 %v180
    %v217 = vunpack.c.l.b16 %v181
    %v218 = vunpack.c.l.b16 %v182
    %v219 = vpack.c.b16 %v204, %v203
    %v220 = vpack.c.b16 %v206, %v205
    %v221 = vpack.c.b16 %v208, %v207
    %v222 = vpack.c.b16 %v210, %v209
    %v223 = vpack.c.b16 %v212, %v211
    %v224 = vpack.c.b16 %v214, %v213
    %v225 = vpack.c.b16 %v216, %v215
    %v226 = vpack.c.b16 %v218, %v217
    %235 = vmatprep.subr.bf16.mxu0 0
    %236 = vmatpush1.bf16.msra.mxu0 %v219
    %237 = vmatprep.subr.bf16.mxu0 0
    %238 = vmatpush1.bf16.msra.mxu0 %v220
    %239 = vmatprep.subr.bf16.mxu0 0
    %240 = vmatpush1.bf16.msra.mxu0 %v221
    %241 = vmatprep.subr.bf16.mxu0 0
    %242 = vmatpush1.bf16.msra.mxu0 %v222
    %243 = vmatprep.subr.bf16.mxu0 0
    %244 = vmatpush1.bf16.msra.mxu0 %v223
    %245 = vmatprep.subr.bf16.mxu0 0
    %246 = vmatpush1.bf16.msra.mxu0 %v224
    %247 = vmatprep.subr.bf16.mxu0 0
    %248 = vmatpush1.bf16.msra.mxu0 %v225
    %249 = vmatprep.subr.bf16.mxu0 0
    %250 = vmatpush1.bf16.msra.mxu0 %v226
    %251 = vmatprep.subr.bf16.mxu0 0
    %252 = vmatpush1.bf16.msra.mxu0 0
    %253 = vmatprep.subr.bf16.mxu0 0
    %254 = vmatpush1.bf16.msra.mxu0 0
    %255 = vmatprep.subr.bf16.mxu0 0
    %256 = vmatpush1.bf16.msra.mxu0 0
    %257 = vmatprep.subr.bf16.mxu0 0
    %258 = vmatpush1.bf16.msra.mxu0 0
    %259 = vmatprep.subr.bf16.mxu0 0
    %260 = vmatpush1.bf16.msra.mxu0 0
    %261 = vmatprep.subr.bf16.mxu0 0
    %262 = vmatpush1.bf16.msra.mxu0 0
    %263 = vmatprep.subr.bf16.mxu0 0
    %264 = vmatpush1.bf16.msra.mxu0 0
    %265 = vmatprep.subr.bf16.mxu0 0
    %266 = vmatpush1.bf16.msra.mxu0 0
    %267 = vmatprep.mubr.bf16.mxu0 0
    %268 = vmatmul.mubr.bf16.gmra.mrb[0].mxu0 %v165
    %v269 = vpop.f32.mrb[0].mxu0
    %v270 = vadd.f32 %v186, %v269
    %v271 = vpop.f32.mrb[0].mxu0
    %v272 = vpop.f32.mrb[0].mxu0
    %v273 = vpop.f32.mrb[0].mxu0
    %274 = vdwg.mxu0
    %v275 = vmax.f32 %v270, 0.0
    %v276 = vpack.c.bf16 %v275, %v275
    %s277 = scalar_lea.vmem [#allocation5], 128
    %v278 = vld [vmem:[%s277] sm:$0xf]
    %v279 = vld [vmem:[%s277 + $0x4] sm:$0xf]
    %v280 = vld [vmem:[%s277 + $0x8] sm:$0xf]
    %v281 = vld [vmem:[%s277 + $0xc] sm:$0xf]
    %v282 = vld [vmem:[%s277 + $0x10] sm:$0xf]
    %v283 = vld [vmem:[%s277 + $0x14] sm:$0xf]
    %v284 = vld [vmem:[%s277 + $0x18] sm:$0xf]
    %v285 = vld [vmem:[%s277 + $0x1c] sm:$0xf]
    %v286 = vld [vmem:[%s277 + $0x20] sm:$0xf]
    %v287 = vld [vmem:[%s277 + $0x24] sm:$0xf]
    %v288 = vld [vmem:[%s277 + $0x28] sm:$0xf]
    %v289 = vld [vmem:[%s277 + $0x2c] sm:$0xf]
    %v290 = vld [vmem:[%s277 + $0x30] sm:$0xf]
    %v291 = vld [vmem:[%s277 + $0x34] sm:$0xf]
    %v292 = vld [vmem:[%s277 + $0x38] sm:$0xf]
    %v293 = vld [vmem:[%s277 + $0x3c] sm:$0xf]
    %v294 = vlaneseq
    %v295 = vshrl.u32 %v294, 7
    %v296 = vsub.s32 2, %v295
    %v297 = vrot.slane %v54, %v296
    %v314 = vunpack.c.l.b16 %v278
    %v315 = vunpack.c.l.b16 %v279
    %v316 = vunpack.c.l.b16 %v280
    %v317 = vunpack.c.l.b16 %v281
    %v318 = vunpack.c.l.b16 %v282
    %v319 = vunpack.c.l.b16 %v283
    %v320 = vunpack.c.l.b16 %v284
    %v321 = vunpack.c.l.b16 %v285
    %v322 = vunpack.c.l.b16 %v286
    %v323 = vunpack.c.l.b16 %v287
    %v324 = vunpack.c.l.b16 %v288
    %v325 = vunpack.c.l.b16 %v289
    %v326 = vunpack.c.l.b16 %v290
    %v327 = vunpack.c.l.b16 %v291
    %v328 = vunpack.c.l.b16 %v292
    %v329 = vunpack.c.l.b16 %v293
    %v330 = vpack.c.b16 %v315, %v314
    %v331 = vpack.c.b16 %v317, %v316
    %v332 = vpack.c.b16 %v319, %v318
    %v333 = vpack.c.b16 %v321, %v320
    %v334 = vpack.c.b16 %v323, %v322
    %v335 = vpack.c.b16 %v325, %v324
    %v336 = vpack.c.b16 %v327, %v326
    %v337 = vpack.c.b16 %v329, %v328
    %346 = vmatprep.subr.bf16.mxu0 0
    %347 = vmatpush1.bf16.msra.mxu0 %v330
    %348 = vmatprep.subr.bf16.mxu0 0
    %349 = vmatpush1.bf16.msra.mxu0 %v331
    %350 = vmatprep.subr.bf16.mxu0 0
    %351 = vmatpush1.bf16.msra.mxu0 %v332
    %352 = vmatprep.subr.bf16.mxu0 0
    %353 = vmatpush1.bf16.msra.mxu0 %v333
    %354 = vmatprep.subr.bf16.mxu0 0
    %355 = vmatpush1.bf16.msra.mxu0 %v334
    %356 = vmatprep.subr.bf16.mxu0 0
    %357 = vmatpush1.bf16.msra.mxu0 %v335
    %358 = vmatprep.subr.bf16.mxu0 0
    %359 = vmatpush1.bf16.msra.mxu0 %v336
    %360 = vmatprep.subr.bf16.mxu0 0
    %361 = vmatpush1.bf16.msra.mxu0 %v337
    %362 = vmatprep.subr.bf16.mxu0 0
    %363 = vmatpush1.bf16.msra.mxu0 0
    %364 = vmatprep.subr.bf16.mxu0 0
    %365 = vmatpush1.bf16.msra.mxu0 0
    %366 = vmatprep.subr.bf16.mxu0 0
    %367 = vmatpush1.bf16.msra.mxu0 0
    %368 = vmatprep.subr.bf16.mxu0 0
    %369 = vmatpush1.bf16.msra.mxu0 0
    %370 = vmatprep.subr.bf16.mxu0 0
    %371 = vmatpush1.bf16.msra.mxu0 0
    %372 = vmatprep.subr.bf16.mxu0 0
    %373 = vmatpush1.bf16.msra.mxu0 0
    %374 = vmatprep.subr.bf16.mxu0 0
    %375 = vmatpush1.bf16.msra.mxu0 0
    %376 = vmatprep.subr.bf16.mxu0 0
    %377 = vmatpush1.bf16.msra.mxu0 0
    %378 = vmatprep.mubr.bf16.mxu0 0
    %379 = vmatmul.mubr.bf16.gmra.mrb[0].mxu0 %v276
    %v380 = vpop.f32.mrb[0].mxu0
    %v381 = vadd.f32 %v297, %v380
    %v382 = vpop.f32.mrb[0].mxu0
    %v383 = vpop.f32.mrb[0].mxu0
    %v384 = vpop.f32.mrb[0].mxu0
    %385 = vdwg.mxu0
    %v386 = vlaneseq
    %v387 = vand.u32 %v386, 127
    %vm388 = vcmp.lt.s32.totalorder %v387, 16
    %v389 = vadd.f32 %v53, %v381
    %v390 = vsel %vm388, %v389, 0.0
    %v391 = vpack.c.bf16 %v390, %v390
    %s392 = scalar_lea.vmem [#allocation5], 192
    %v393 = vld [vmem:[%s392] sm:$0xf]
    %v394 = vld [vmem:[%s392 + $0x4] sm:$0xf]
    %v395 = vld [vmem:[%s392 + $0x8] sm:$0xf]
    %v396 = vld [vmem:[%s392 + $0xc] sm:$0xf]
    %v397 = vld [vmem:[%s392 + $0x10] sm:$0xf]
    %v398 = vld [vmem:[%s392 + $0x14] sm:$0xf]
    %v399 = vld [vmem:[%s392 + $0x18] sm:$0xf]
    %v400 = vld [vmem:[%s392 + $0x1c] sm:$0xf]
    %v401 = vld [vmem:[%s392 + $0x20] sm:$0xf]
    %v402 = vld [vmem:[%s392 + $0x24] sm:$0xf]
    %v403 = vld [vmem:[%s392 + $0x28] sm:$0xf]
    %v404 = vld [vmem:[%s392 + $0x2c] sm:$0xf]
    %v405 = vld [vmem:[%s392 + $0x30] sm:$0xf]
    %v406 = vld [vmem:[%s392 + $0x34] sm:$0xf]
    %v407 = vld [vmem:[%s392 + $0x38] sm:$0xf]
    %v408 = vld [vmem:[%s392 + $0x3c] sm:$0xf]
    %v409 = vlaneseq
    %v410 = vshrl.u32 %v409, 7
    %v411 = vsub.s32 3, %v410
    %v412 = vrot.slane %v54, %v411
    %v429 = vunpack.c.l.b16 %v393
    %v430 = vunpack.c.l.b16 %v394
    %v431 = vunpack.c.l.b16 %v395
    %v432 = vunpack.c.l.b16 %v396
    %v433 = vunpack.c.l.b16 %v397
    %v434 = vunpack.c.l.b16 %v398
    %v435 = vunpack.c.l.b16 %v399
    %v436 = vunpack.c.l.b16 %v400
    %v437 = vunpack.c.l.b16 %v401
    %v438 = vunpack.c.l.b16 %v402
    %v439 = vunpack.c.l.b16 %v403
    %v440 = vunpack.c.l.b16 %v404
    %v441 = vunpack.c.l.b16 %v405
    %v442 = vunpack.c.l.b16 %v406
    %v443 = vunpack.c.l.b16 %v407
    %v444 = vunpack.c.l.b16 %v408
    %v445 = vpack.c.b16 %v430, %v429
    %v446 = vpack.c.b16 %v432, %v431
    %v447 = vpack.c.b16 %v434, %v433
    %v448 = vpack.c.b16 %v436, %v435
    %v449 = vpack.c.b16 %v438, %v437
    %v450 = vpack.c.b16 %v440, %v439
    %v451 = vpack.c.b16 %v442, %v441
    %v452 = vpack.c.b16 %v444, %v443
    %461 = vmatprep.subr.bf16.mxu0 0
    %462 = vmatpush1.bf16.msra.mxu0 %v445
    %463 = vmatprep.subr.bf16.mxu0 0
    %464 = vmatpush1.bf16.msra.mxu0 %v446
    %465 = vmatprep.subr.bf16.mxu0 0
    %466 = vmatpush1.bf16.msra.mxu0 %v447
    %467 = vmatprep.subr.bf16.mxu0 0
    %468 = vmatpush1.bf16.msra.mxu0 %v448
    %469 = vmatprep.subr.bf16.mxu0 0
    %470 = vmatpush1.bf16.msra.mxu0 %v449
    %471 = vmatprep.subr.bf16.mxu0 0
    %472 = vmatpush1.bf16.msra.mxu0 %v450
    %473 = vmatprep.subr.bf16.mxu0 0
    %474 = vmatpush1.bf16.msra.mxu0 %v451
    %475 = vmatprep.subr.bf16.mxu0 0
    %476 = vmatpush1.bf16.msra.mxu0 %v452
    %477 = vmatprep.subr.bf16.mxu0 0
    %478 = vmatpush1.bf16.msra.mxu0 0
    %479 = vmatprep.subr.bf16.mxu0 0
    %480 = vmatpush1.bf16.msra.mxu0 0
    %481 = vmatprep.subr.bf16.mxu0 0
    %482 = vmatpush1.bf16.msra.mxu0 0
    %483 = vmatprep.subr.bf16.mxu0 0
    %484 = vmatpush1.bf16.msra.mxu0 0
    %485 = vmatprep.subr.bf16.mxu0 0
    %486 = vmatpush1.bf16.msra.mxu0 0
    %487 = vmatprep.subr.bf16.mxu0 0
    %488 = vmatpush1.bf16.msra.mxu0 0
    %489 = vmatprep.subr.bf16.mxu0 0
    %490 = vmatpush1.bf16.msra.mxu0 0
    %491 = vmatprep.subr.bf16.mxu0 0
    %492 = vmatpush1.bf16.msra.mxu0 0
    %493 = vmatprep.mubr.bf16.mxu0 0
    %494 = vmatmul.mubr.bf16.gmra.mrb[0].mxu0 %v391
    %v495 = vpop.f32.mrb[0].mxu0
    %v496 = vadd.f32 %v412, %v495
    %v497 = vpop.f32.mrb[0].mxu0
    %v498 = vpop.f32.mrb[0].mxu0
    %v499 = vpop.f32.mrb[0].mxu0
    %500 = vdwg.mxu0
    %v501 = vmax.f32 %v496, 0.0
    %v502 = vpack.c.bf16 %v501, %v501
    %s503 = scalar_lea.vmem [#allocation5], 256
    %v504 = vld [vmem:[%s503] sm:$0xf]
    %v505 = vld [vmem:[%s503 + $0x4] sm:$0xf]
    %v506 = vld [vmem:[%s503 + $0x8] sm:$0xf]
    %v507 = vld [vmem:[%s503 + $0xc] sm:$0xf]
    %v508 = vld [vmem:[%s503 + $0x10] sm:$0xf]
    %v509 = vld [vmem:[%s503 + $0x14] sm:$0xf]
    %v510 = vld [vmem:[%s503 + $0x18] sm:$0xf]
    %v511 = vld [vmem:[%s503 + $0x1c] sm:$0xf]
    %v512 = vld [vmem:[%s503 + $0x20] sm:$0xf]
    %v513 = vld [vmem:[%s503 + $0x24] sm:$0xf]
    %v514 = vld [vmem:[%s503 + $0x28] sm:$0xf]
    %v515 = vld [vmem:[%s503 + $0x2c] sm:$0xf]
    %v516 = vld [vmem:[%s503 + $0x30] sm:$0xf]
    %v517 = vld [vmem:[%s503 + $0x34] sm:$0xf]
    %v518 = vld [vmem:[%s503 + $0x38] sm:$0xf]
    %v519 = vld [vmem:[%s503 + $0x3c] sm:$0xf]
    %v520 = vlaneseq
    %v521 = vshrl.u32 %v520, 7
    %v522 = vsub.s32 4, %v521
    %v523 = vrot.slane %v54, %v522
    %v540 = vunpack.c.l.b16 %v504
    %v541 = vunpack.c.l.b16 %v505
    %v542 = vunpack.c.l.b16 %v506
    %v543 = vunpack.c.l.b16 %v507
    %v544 = vunpack.c.l.b16 %v508
    %v545 = vunpack.c.l.b16 %v509
    %v546 = vunpack.c.l.b16 %v510
    %v547 = vunpack.c.l.b16 %v511
    %v548 = vunpack.c.l.b16 %v512
    %v549 = vunpack.c.l.b16 %v513
    %v550 = vunpack.c.l.b16 %v514
    %v551 = vunpack.c.l.b16 %v515
    %v552 = vunpack.c.l.b16 %v516
    %v553 = vunpack.c.l.b16 %v517
    %v554 = vunpack.c.l.b16 %v518
    %v555 = vunpack.c.l.b16 %v519
    %v556 = vpack.c.b16 %v541, %v540
    %v557 = vpack.c.b16 %v543, %v542
    %v558 = vpack.c.b16 %v545, %v544
    %v559 = vpack.c.b16 %v547, %v546
    %v560 = vpack.c.b16 %v549, %v548
    %v561 = vpack.c.b16 %v551, %v550
    %v562 = vpack.c.b16 %v553, %v552
    %v563 = vpack.c.b16 %v555, %v554
    %572 = vmatprep.subr.bf16.mxu0 0
    %573 = vmatpush1.bf16.msra.mxu0 %v556
    %574 = vmatprep.subr.bf16.mxu0 0
    %575 = vmatpush1.bf16.msra.mxu0 %v557
    %576 = vmatprep.subr.bf16.mxu0 0
    %577 = vmatpush1.bf16.msra.mxu0 %v558
    %578 = vmatprep.subr.bf16.mxu0 0
    %579 = vmatpush1.bf16.msra.mxu0 %v559
    %580 = vmatprep.subr.bf16.mxu0 0
    %581 = vmatpush1.bf16.msra.mxu0 %v560
    %582 = vmatprep.subr.bf16.mxu0 0
    %583 = vmatpush1.bf16.msra.mxu0 %v561
    %584 = vmatprep.subr.bf16.mxu0 0
    %585 = vmatpush1.bf16.msra.mxu0 %v562
    %586 = vmatprep.subr.bf16.mxu0 0
    %587 = vmatpush1.bf16.msra.mxu0 %v563
    %588 = vmatprep.subr.bf16.mxu0 0
    %589 = vmatpush1.bf16.msra.mxu0 0
    %590 = vmatprep.subr.bf16.mxu0 0
    %591 = vmatpush1.bf16.msra.mxu0 0
    %592 = vmatprep.subr.bf16.mxu0 0
    %593 = vmatpush1.bf16.msra.mxu0 0
    %594 = vmatprep.subr.bf16.mxu0 0
    %595 = vmatpush1.bf16.msra.mxu0 0
    %596 = vmatprep.subr.bf16.mxu0 0
    %597 = vmatpush1.bf16.msra.mxu0 0
    %598 = vmatprep.subr.bf16.mxu0 0
    %599 = vmatpush1.bf16.msra.mxu0 0
    %600 = vmatprep.subr.bf16.mxu0 0
    %601 = vmatpush1.bf16.msra.mxu0 0
    %602 = vmatprep.subr.bf16.mxu0 0
    %603 = vmatpush1.bf16.msra.mxu0 0
    %604 = vmatprep.mubr.bf16.mxu0 0
    %605 = vmatmul.mubr.bf16.gmra.mrb[0].mxu0 %v502
    %v606 = vpop.f32.mrb[0].mxu0
    %v607 = vadd.f32 %v523, %v606
    %v608 = vpop.f32.mrb[0].mxu0
    %v609 = vpop.f32.mrb[0].mxu0
    %v610 = vpop.f32.mrb[0].mxu0
    %611 = vdwg.mxu0
    %v612 = vmax.f32 %v607, 0.0
    %v613 = vpack.c.bf16 %v612, %v612
    %s614 = scalar_lea.vmem [#allocation5], 320
    %v615 = vld [vmem:[%s614] sm:$0xf]
    %v616 = vld [vmem:[%s614 + $0x4] sm:$0xf]
    %v617 = vld [vmem:[%s614 + $0x8] sm:$0xf]
    %v618 = vld [vmem:[%s614 + $0xc] sm:$0xf]
    %v619 = vld [vmem:[%s614 + $0x10] sm:$0xf]
    %v620 = vld [vmem:[%s614 + $0x14] sm:$0xf]
    %v621 = vld [vmem:[%s614 + $0x18] sm:$0xf]
    %v622 = vld [vmem:[%s614 + $0x1c] sm:$0xf]
    %v623 = vld [vmem:[%s614 + $0x20] sm:$0xf]
    %v624 = vld [vmem:[%s614 + $0x24] sm:$0xf]
    %v625 = vld [vmem:[%s614 + $0x28] sm:$0xf]
    %v626 = vld [vmem:[%s614 + $0x2c] sm:$0xf]
    %v627 = vld [vmem:[%s614 + $0x30] sm:$0xf]
    %v628 = vld [vmem:[%s614 + $0x34] sm:$0xf]
    %v629 = vld [vmem:[%s614 + $0x38] sm:$0xf]
    %v630 = vld [vmem:[%s614 + $0x3c] sm:$0xf]
    %v631 = vlaneseq
    %v632 = vshrl.u32 %v631, 7
    %v633 = vsub.s32 5, %v632
    %v634 = vrot.slane %v54, %v633
    %v651 = vunpack.c.l.b16 %v615
    %v652 = vunpack.c.l.b16 %v616
    %v653 = vunpack.c.l.b16 %v617
    %v654 = vunpack.c.l.b16 %v618
    %v655 = vunpack.c.l.b16 %v619
    %v656 = vunpack.c.l.b16 %v620
    %v657 = vunpack.c.l.b16 %v621
    %v658 = vunpack.c.l.b16 %v622
    %v659 = vunpack.c.l.b16 %v623
    %v660 = vunpack.c.l.b16 %v624
    %v661 = vunpack.c.l.b16 %v625
    %v662 = vunpack.c.l.b16 %v626
    %v663 = vunpack.c.l.b16 %v627
    %v664 = vunpack.c.l.b16 %v628
    %v665 = vunpack.c.l.b16 %v629
    %v666 = vunpack.c.l.b16 %v630
    %v667 = vpack.c.b16 %v652, %v651
    %v668 = vpack.c.b16 %v654, %v653
    %v669 = vpack.c.b16 %v656, %v655
    %v670 = vpack.c.b16 %v658, %v657
    %v671 = vpack.c.b16 %v660, %v659
    %v672 = vpack.c.b16 %v662, %v661
    %v673 = vpack.c.b16 %v664, %v663
    %v674 = vpack.c.b16 %v666, %v665
    %683 = vmatprep.subr.bf16.mxu0 0
    %684 = vmatpush1.bf16.msra.mxu0 %v667
    %685 = vmatprep.subr.bf16.mxu0 0
    %686 = vmatpush1.bf16.msra.mxu0 %v668
    %687 = vmatprep.subr.bf16.mxu0 0
    %688 = vmatpush1.bf16.msra.mxu0 %v669
    %689 = vmatprep.subr.bf16.mxu0 0
    %690 = vmatpush1.bf16.msra.mxu0 %v670
    %691 = vmatprep.subr.bf16.mxu0 0
    %692 = vmatpush1.bf16.msra.mxu0 %v671
    %693 = vmatprep.subr.bf16.mxu0 0
    %694 = vmatpush1.bf16.msra.mxu0 %v672
    %695 = vmatprep.subr.bf16.mxu0 0
    %696 = vmatpush1.bf16.msra.mxu0 %v673
    %697 = vmatprep.subr.bf16.mxu0 0
    %698 = vmatpush1.bf16.msra.mxu0 %v674
    %699 = vmatprep.subr.bf16.mxu0 0
    %700 = vmatpush1.bf16.msra.mxu0 0
    %701 = vmatprep.subr.bf16.mxu0 0
    %702 = vmatpush1.bf16.msra.mxu0 0
    %703 = vmatprep.subr.bf16.mxu0 0
    %704 = vmatpush1.bf16.msra.mxu0 0
    %705 = vmatprep.subr.bf16.mxu0 0
    %706 = vmatpush1.bf16.msra.mxu0 0
    %707 = vmatprep.subr.bf16.mxu0 0
    %708 = vmatpush1.bf16.msra.mxu0 0
    %709 = vmatprep.subr.bf16.mxu0 0
    %710 = vmatpush1.bf16.msra.mxu0 0
    %711 = vmatprep.subr.bf16.mxu0 0
    %712 = vmatpush1.bf16.msra.mxu0 0
    %713 = vmatprep.subr.bf16.mxu0 0
    %714 = vmatpush1.bf16.msra.mxu0 0
    %715 = vmatprep.mubr.bf16.mxu0 0
    %716 = vmatmul.mubr.bf16.gmra.mrb[0].mxu0 %v613
    %v717 = vpop.f32.mrb[0].mxu0
    %v718 = vadd.f32 %v634, %v717
    %v719 = vpop.f32.mrb[0].mxu0
    %v720 = vpop.f32.mrb[0].mxu0
    %v721 = vpop.f32.mrb[0].mxu0
    %722 = vdwg.mxu0
    %723 = vst [vmem:[#allocation8] sm:$0xff] %v390
    %s724 = scalar_lea.vmem [#allocation8], 8
    %725 = vst [vmem:[%s724] sm:$0xff] %v718
    // Predicated region
    $region26: #{tpu_custom_call.1} parent=1 // pred_check
      _
    $region27: #{tpu_custom_call.1} parent=1 // pred_check_branch
      %727 = sbr.rel (0) target = $region29
    $region28: #{tpu_custom_call.1} parent=1 // pred_region
      %s729 = ssub.s32 256, 256
      %730 = vsyncadd [#allocation4], %s729
      %s731 = sshll.u32 [#allocation8], 4
      %s732 = int_to_ptr.vmem [resolvable:$true] %s731
      %737 = dma.vmem_to_hbm [thread:$0]  %s732, 256, %s3, [#allocation4], 128, 128, 8
    $region29: #{tpu_custom_call.1} parent=1 // pred_fallthru
      _
    // Predicated region
    $region30: #{tpu_custom_call.1} parent=1 // pred_check
      _
    $region31: #{tpu_custom_call.1} parent=1 // pred_check_branch
      %739 = sbr.rel (0) target = $region33
    $region32: #{tpu_custom_call.1} parent=1 // pred_region
      %740 = dma.done [#allocation4], 256
    $region33: #{tpu_custom_call.1} parent=1 // pred_fallthru
      _
    %741 = vsyncpa [#allocation3], 1
    %742 = vsyncpa [#allocation6], 1
    %743 = vsyncpa [#allocation4], 1

</llo_original>
